<compile_context>
chip_gen: v6e
topology: v6e:2x2x1
jax: 0.10.0
libtpu: 0.0.40
codegen_flags: <defaults>
</compile_context>

<pallas_src>
import functools

import jax
import jax.numpy as jnp
from jax.experimental import pallas as pl
from jax.experimental.pallas import tpu as pltpu

INPUT_SIZE = 2
HIDDEN_SIZE1 = 5
HIDDEN_SIZE2 = 6
OUTPUT_SIZE = 1

# Flat packed-parameter layout (58 f32 scalars total).
W1_OFF = 0
B1_OFF = W1_OFF + HIDDEN_SIZE1 * INPUT_SIZE        # 10
W2_OFF = B1_OFF + HIDDEN_SIZE1                     # 15
B2_OFF = W2_OFF + HIDDEN_SIZE2 * HIDDEN_SIZE1      # 45
W3_OFF = B2_OFF + HIDDEN_SIZE2                     # 51
B3_OFF = W3_OFF + OUTPUT_SIZE * HIDDEN_SIZE2       # 57
NPARAMS = B3_OFF + OUTPUT_SIZE                     # 58


def _sigmoid(x):
    # Exactly sigmoid(x) = 0.5*(tanh(x/2)+1): one EUP op per activation.
    return 0.5 * jnp.tanh(0.5 * x) + 0.5


def mlp_kernel(p_ref, x_ref, o_ref):
    """p_ref : SMEM (NPARAMS,) f32 packed weights+biases.
    x_ref : VMEM (INPUT_SIZE, TB)  -- batch on the 128-lane axis.
    o_ref : VMEM (OUTPUT_SIZE, TB)
    Every layer is a tiny dense: computed as VPU scalar-broadcast MACs.
    """

    def dense_sigmoid(acts, n_in, n_out, w_off, b_off):
        outs = []
        for j in range(n_out):                       # static unroll (<= 6)
            z = acts[0] * p_ref[w_off + j * n_in]
            for i in range(1, n_in):
                z = z + acts[i] * p_ref[w_off + j * n_in + i]
            z = z + p_ref[b_off + j]
            outs.append(_sigmoid(z))
        return outs

    x_rows = [x_ref[i:i + 1, :] for i in range(INPUT_SIZE)]   # each (1, TB)
    a1 = dense_sigmoid(x_rows, INPUT_SIZE, HIDDEN_SIZE1, W1_OFF, B1_OFF)
    a2 = dense_sigmoid(a1, HIDDEN_SIZE1, HIDDEN_SIZE2, W2_OFF, B2_OFF)
    a3 = dense_sigmoid(a2, HIDDEN_SIZE2, OUTPUT_SIZE, W3_OFF, B3_OFF)
    for j in range(OUTPUT_SIZE):
        o_ref[j:j + 1, :] = a3[j].astype(o_ref.dtype)


def pack_params(w1, b1, w2, b2, w3, b3):
    """Pack PyTorch-convention (out, in) weights + (out,) biases into one flat
    f32 buffer. Done once at init time, not per forward call."""
    packed = jnp.concatenate([
        w1.reshape(-1), b1.reshape(-1),
        w2.reshape(-1), b2.reshape(-1),
        w3.reshape(-1), b3.reshape(-1),
    ]).astype(jnp.float32)
    assert packed.shape == (NPARAMS,), packed.shape
    return packed


@functools.partial(jax.jit, static_argnames=("tile_b",))
def mlp_forward(x, packed_params, tile_b=512):
    """x: (B, INPUT_SIZE) in PyTorch convention; returns (B, OUTPUT_SIZE)."""
    B = x.shape[0]
    tb = min(tile_b, pl.cdiv(B, 128) * 128)      # lane tile, multiple of 128
    bp = pl.cdiv(B, tb) * tb                     # padded batch
    # Put batch on the lane axis: (INPUT_SIZE, Bp), zero-padded tail lanes.
    xt = jnp.zeros((INPUT_SIZE, bp), x.dtype).at[:, :B].set(x.T)

    out_t = pl.pallas_call(
        mlp_kernel,
        out_shape=jax.ShapeDtypeStruct((OUTPUT_SIZE, bp), x.dtype),
        grid=(bp // tb,),
        in_specs=[
            pl.BlockSpec(memory_space=pltpu.MemorySpace.SMEM),   # packed params
            pl.BlockSpec((INPUT_SIZE, tb), lambda i: (0, i)),    # x tile
        ],
        out_specs=pl.BlockSpec((OUTPUT_SIZE, tb), lambda i: (0, i)),
        compiler_params=pltpu.CompilerParams(
            dimension_semantics=("parallel",)),   # megacore shard on v7x
    )(packed_params, xt)

    return out_t[:, :B].T                         # back to (B, OUTPUT_SIZE)


def init_params(key):
    """Matches the PyTorch __init__: weights ~ N(0,1), biases = 0."""
    k1, k2, k3 = jax.random.split(key, 3)
    w1 = jax.random.normal(k1, (HIDDEN_SIZE1, INPUT_SIZE), jnp.float32)
    b1 = jnp.zeros((HIDDEN_SIZE1,), jnp.float32)
    w2 = jax.random.normal(k2, (HIDDEN_SIZE2, HIDDEN_SIZE1), jnp.float32)
    b2 = jnp.zeros((HIDDEN_SIZE2,), jnp.float32)
    w3 = jax.random.normal(k3, (OUTPUT_SIZE, HIDDEN_SIZE2), jnp.float32)
    b3 = jnp.zeros((OUTPUT_SIZE,), jnp.float32)
    return w1, b1, w2, b2, w3, b3


def reference_forward(x, w1, b1, w2, b2, w3, b3):
    a1 = jax.nn.sigmoid(x @ w1.T + b1)
    a2 = jax.nn.sigmoid(a1 @ w2.T + b2)
    a3 = jax.nn.sigmoid(a2 @ w3.T + b3)
    return a3


if __name__ == "__main__":
    key = jax.random.PRNGKey(0)
    k_params, k_x = jax.random.split(key)
    w1, b1, w2, b2, w3, b3 = init_params(k_params)
    packed = pack_params(w1, b1, w2, b2, w3, b3)

    batch = 8
    x = jax.random.normal(k_x, (batch, INPUT_SIZE), jnp.float32)

    out = mlp_forward(x, packed)
    out = jax.block_until_ready(out)

    ref = reference_forward(x, w1, b1, w2, b2, w3, b3)
    assert out.shape == (batch, OUTPUT_SIZE), out.shape
    assert jnp.allclose(out, ref, atol=1e-5, rtol=1e-5), (out, ref)

    print("KERNEL_OK")
</pallas_src>

<mosaic_0001>
module attributes {stable_mosaic.version = 11 : i64} {
  func.func @mlp_kernel(%arg0: i32, %arg1: memref<58xf32, #tpu.memory_space<smem>>, %arg2: memref<2x128xf32, #tpu.memory_space<vmem>>, %arg3: memref<1x128xf32, #tpu.memory_space<vmem>>) attributes {dimension_semantics = [#tpu.dimension_semantics<parallel>], iteration_bounds = array<i64: 1>, scalar_prefetch = 0 : i64, scratch_operands = 0 : i64, tpu.core_type = #tpu.core_type<tc>, window_params = [{transform_indices = @transform_0, window_bounds = array<i64: 58>}, {transform_indices = @transform_1, window_bounds = array<i64: 2, 128>}, {transform_indices = @transform_2, window_bounds = array<i64: 1, 128>}]} {
    %c0 = arith.constant 0 : index
    %c0_0 = arith.constant 0 : index
    %0 = vector.load %arg2[%c0, %c0_0] : memref<2x128xf32, #tpu.memory_space<vmem>>, vector<1x128xf32>
    %c1 = arith.constant 1 : index
    %c0_1 = arith.constant 0 : index
    %1 = vector.load %arg2[%c1, %c0_1] : memref<2x128xf32, #tpu.memory_space<vmem>>, vector<1x128xf32>
    %c0_2 = arith.constant 0 : index
    %2 = memref.load %arg1[%c0_2] : memref<58xf32, #tpu.memory_space<smem>>
    %3 = vector.broadcast %2 : f32 to vector<1x128xf32>
    %4 = arith.mulf %0, %3 : vector<1x128xf32>
    %c1_3 = arith.constant 1 : index
    %5 = memref.load %arg1[%c1_3] : memref<58xf32, #tpu.memory_space<smem>>
    %6 = vector.broadcast %5 : f32 to vector<1x128xf32>
    %7 = arith.mulf %1, %6 : vector<1x128xf32>
    %8 = arith.addf %4, %7 : vector<1x128xf32>
    %c10 = arith.constant 10 : index
    %9 = memref.load %arg1[%c10] : memref<58xf32, #tpu.memory_space<smem>>
    %10 = vector.broadcast %9 : f32 to vector<1x128xf32>
    %11 = arith.addf %8, %10 : vector<1x128xf32>
    %cst = arith.constant 5.000000e-01 : f32
    %12 = vector.broadcast %cst : f32 to vector<1x128xf32>
    %13 = arith.mulf %12, %11 : vector<1x128xf32>
    %14 = math.tanh %13 : vector<1x128xf32>
    %cst_4 = arith.constant 5.000000e-01 : f32
    %15 = vector.broadcast %cst_4 : f32 to vector<1x128xf32>
    %16 = arith.mulf %15, %14 : vector<1x128xf32>
    %cst_5 = arith.constant 5.000000e-01 : f32
    %17 = vector.broadcast %cst_5 : f32 to vector<1x128xf32>
    %18 = arith.addf %16, %17 : vector<1x128xf32>
    %c2 = arith.constant 2 : index
    %19 = memref.load %arg1[%c2] : memref<58xf32, #tpu.memory_space<smem>>
    %20 = vector.broadcast %19 : f32 to vector<1x128xf32>
    %21 = arith.mulf %0, %20 : vector<1x128xf32>
    %c3 = arith.constant 3 : index
    %22 = memref.load %arg1[%c3] : memref<58xf32, #tpu.memory_space<smem>>
    %23 = vector.broadcast %22 : f32 to vector<1x128xf32>
    %24 = arith.mulf %1, %23 : vector<1x128xf32>
    %25 = arith.addf %21, %24 : vector<1x128xf32>
    %c11 = arith.constant 11 : index
    %26 = memref.load %arg1[%c11] : memref<58xf32, #tpu.memory_space<smem>>
    %27 = vector.broadcast %26 : f32 to vector<1x128xf32>
    %28 = arith.addf %25, %27 : vector<1x128xf32>
    %cst_6 = arith.constant 5.000000e-01 : f32
    %29 = vector.broadcast %cst_6 : f32 to vector<1x128xf32>
    %30 = arith.mulf %29, %28 : vector<1x128xf32>
    %31 = math.tanh %30 : vector<1x128xf32>
    %cst_7 = arith.constant 5.000000e-01 : f32
    %32 = vector.broadcast %cst_7 : f32 to vector<1x128xf32>
    %33 = arith.mulf %32, %31 : vector<1x128xf32>
    %cst_8 = arith.constant 5.000000e-01 : f32
    %34 = vector.broadcast %cst_8 : f32 to vector<1x128xf32>
    %35 = arith.addf %33, %34 : vector<1x128xf32>
    %c4 = arith.constant 4 : index
    %36 = memref.load %arg1[%c4] : memref<58xf32, #tpu.memory_space<smem>>
    %37 = vector.broadcast %36 : f32 to vector<1x128xf32>
    %38 = arith.mulf %0, %37 : vector<1x128xf32>
    %c5 = arith.constant 5 : index
    %39 = memref.load %arg1[%c5] : memref<58xf32, #tpu.memory_space<smem>>
    %40 = vector.broadcast %39 : f32 to vector<1x128xf32>
    %41 = arith.mulf %1, %40 : vector<1x128xf32>
    %42 = arith.addf %38, %41 : vector<1x128xf32>
    %c12 = arith.constant 12 : index
    %43 = memref.load %arg1[%c12] : memref<58xf32, #tpu.memory_space<smem>>
    %44 = vector.broadcast %43 : f32 to vector<1x128xf32>
    %45 = arith.addf %42, %44 : vector<1x128xf32>
    %cst_9 = arith.constant 5.000000e-01 : f32
    %46 = vector.broadcast %cst_9 : f32 to vector<1x128xf32>
    %47 = arith.mulf %46, %45 : vector<1x128xf32>
    %48 = math.tanh %47 : vector<1x128xf32>
    %cst_10 = arith.constant 5.000000e-01 : f32
    %49 = vector.broadcast %cst_10 : f32 to vector<1x128xf32>
    %50 = arith.mulf %49, %48 : vector<1x128xf32>
    %cst_11 = arith.constant 5.000000e-01 : f32
    %51 = vector.broadcast %cst_11 : f32 to vector<1x128xf32>
    %52 = arith.addf %50, %51 : vector<1x128xf32>
    %c6 = arith.constant 6 : index
    %53 = memref.load %arg1[%c6] : memref<58xf32, #tpu.memory_space<smem>>
    %54 = vector.broadcast %53 : f32 to vector<1x128xf32>
    %55 = arith.mulf %0, %54 : vector<1x128xf32>
    %c7 = arith.constant 7 : index
    %56 = memref.load %arg1[%c7] : memref<58xf32, #tpu.memory_space<smem>>
    %57 = vector.broadcast %56 : f32 to vector<1x128xf32>
    %58 = arith.mulf %1, %57 : vector<1x128xf32>
    %59 = arith.addf %55, %58 : vector<1x128xf32>
    %c13 = arith.constant 13 : index
    %60 = memref.load %arg1[%c13] : memref<58xf32, #tpu.memory_space<smem>>
    %61 = vector.broadcast %60 : f32 to vector<1x128xf32>
    %62 = arith.addf %59, %61 : vector<1x128xf32>
    %cst_12 = arith.constant 5.000000e-01 : f32
    %63 = vector.broadcast %cst_12 : f32 to vector<1x128xf32>
    %64 = arith.mulf %63, %62 : vector<1x128xf32>
    %65 = math.tanh %64 : vector<1x128xf32>
    %cst_13 = arith.constant 5.000000e-01 : f32
    %66 = vector.broadcast %cst_13 : f32 to vector<1x128xf32>
    %67 = arith.mulf %66, %65 : vector<1x128xf32>
    %cst_14 = arith.constant 5.000000e-01 : f32
    %68 = vector.broadcast %cst_14 : f32 to vector<1x128xf32>
    %69 = arith.addf %67, %68 : vector<1x128xf32>
    %c8 = arith.constant 8 : index
    %70 = memref.load %arg1[%c8] : memref<58xf32, #tpu.memory_space<smem>>
    %71 = vector.broadcast %70 : f32 to vector<1x128xf32>
    %72 = arith.mulf %0, %71 : vector<1x128xf32>
    %c9 = arith.constant 9 : index
    %73 = memref.load %arg1[%c9] : memref<58xf32, #tpu.memory_space<smem>>
    %74 = vector.broadcast %73 : f32 to vector<1x128xf32>
    %75 = arith.mulf %1, %74 : vector<1x128xf32>
    %76 = arith.addf %72, %75 : vector<1x128xf32>
    %c14 = arith.constant 14 : index
    %77 = memref.load %arg1[%c14] : memref<58xf32, #tpu.memory_space<smem>>
    %78 = vector.broadcast %77 : f32 to vector<1x128xf32>
    %79 = arith.addf %76, %78 : vector<1x128xf32>
    %cst_15 = arith.constant 5.000000e-01 : f32
    %80 = vector.broadcast %cst_15 : f32 to vector<1x128xf32>
    %81 = arith.mulf %80, %79 : vector<1x128xf32>
    %82 = math.tanh %81 : vector<1x128xf32>
    %cst_16 = arith.constant 5.000000e-01 : f32
    %83 = vector.broadcast %cst_16 : f32 to vector<1x128xf32>
    %84 = arith.mulf %83, %82 : vector<1x128xf32>
    %cst_17 = arith.constant 5.000000e-01 : f32
    %85 = vector.broadcast %cst_17 : f32 to vector<1x128xf32>
    %86 = arith.addf %84, %85 : vector<1x128xf32>
    %c15 = arith.constant 15 : index
    %87 = memref.load %arg1[%c15] : memref<58xf32, #tpu.memory_space<smem>>
    %88 = vector.broadcast %87 : f32 to vector<1x128xf32>
    %89 = arith.mulf %18, %88 : vector<1x128xf32>
    %c16 = arith.constant 16 : index
    %90 = memref.load %arg1[%c16] : memref<58xf32, #tpu.memory_space<smem>>
    %91 = vector.broadcast %90 : f32 to vector<1x128xf32>
    %92 = arith.mulf %35, %91 : vector<1x128xf32>
    %93 = arith.addf %89, %92 : vector<1x128xf32>
    %c17 = arith.constant 17 : index
    %94 = memref.load %arg1[%c17] : memref<58xf32, #tpu.memory_space<smem>>
    %95 = vector.broadcast %94 : f32 to vector<1x128xf32>
    %96 = arith.mulf %52, %95 : vector<1x128xf32>
    %97 = arith.addf %93, %96 : vector<1x128xf32>
    %c18 = arith.constant 18 : index
    %98 = memref.load %arg1[%c18] : memref<58xf32, #tpu.memory_space<smem>>
    %99 = vector.broadcast %98 : f32 to vector<1x128xf32>
    %100 = arith.mulf %69, %99 : vector<1x128xf32>
    %101 = arith.addf %97, %100 : vector<1x128xf32>
    %c19 = arith.constant 19 : index
    %102 = memref.load %arg1[%c19] : memref<58xf32, #tpu.memory_space<smem>>
    %103 = vector.broadcast %102 : f32 to vector<1x128xf32>
    %104 = arith.mulf %86, %103 : vector<1x128xf32>
    %105 = arith.addf %101, %104 : vector<1x128xf32>
    %c45 = arith.constant 45 : index
    %106 = memref.load %arg1[%c45] : memref<58xf32, #tpu.memory_space<smem>>
    %107 = vector.broadcast %106 : f32 to vector<1x128xf32>
    %108 = arith.addf %105, %107 : vector<1x128xf32>
    %cst_18 = arith.constant 5.000000e-01 : f32
    %109 = vector.broadcast %cst_18 : f32 to vector<1x128xf32>
    %110 = arith.mulf %109, %108 : vector<1x128xf32>
    %111 = math.tanh %110 : vector<1x128xf32>
    %cst_19 = arith.constant 5.000000e-01 : f32
    %112 = vector.broadcast %cst_19 : f32 to vector<1x128xf32>
    %113 = arith.mulf %112, %111 : vector<1x128xf32>
    %cst_20 = arith.constant 5.000000e-01 : f32
    %114 = vector.broadcast %cst_20 : f32 to vector<1x128xf32>
    %115 = arith.addf %113, %114 : vector<1x128xf32>
    %c20 = arith.constant 20 : index
    %116 = memref.load %arg1[%c20] : memref<58xf32, #tpu.memory_space<smem>>
    %117 = vector.broadcast %116 : f32 to vector<1x128xf32>
    %118 = arith.mulf %18, %117 : vector<1x128xf32>
    %c21 = arith.constant 21 : index
    %119 = memref.load %arg1[%c21] : memref<58xf32, #tpu.memory_space<smem>>
    %120 = vector.broadcast %119 : f32 to vector<1x128xf32>
    %121 = arith.mulf %35, %120 : vector<1x128xf32>
    %122 = arith.addf %118, %121 : vector<1x128xf32>
    %c22 = arith.constant 22 : index
    %123 = memref.load %arg1[%c22] : memref<58xf32, #tpu.memory_space<smem>>
    %124 = vector.broadcast %123 : f32 to vector<1x128xf32>
    %125 = arith.mulf %52, %124 : vector<1x128xf32>
    %126 = arith.addf %122, %125 : vector<1x128xf32>
    %c23 = arith.constant 23 : index
    %127 = memref.load %arg1[%c23] : memref<58xf32, #tpu.memory_space<smem>>
    %128 = vector.broadcast %127 : f32 to vector<1x128xf32>
    %129 = arith.mulf %69, %128 : vector<1x128xf32>
    %130 = arith.addf %126, %129 : vector<1x128xf32>
    %c24 = arith.constant 24 : index
    %131 = memref.load %arg1[%c24] : memref<58xf32, #tpu.memory_space<smem>>
    %132 = vector.broadcast %131 : f32 to vector<1x128xf32>
    %133 = arith.mulf %86, %132 : vector<1x128xf32>
    %134 = arith.addf %130, %133 : vector<1x128xf32>
    %c46 = arith.constant 46 : index
    %135 = memref.load %arg1[%c46] : memref<58xf32, #tpu.memory_space<smem>>
    %136 = vector.broadcast %135 : f32 to vector<1x128xf32>
    %137 = arith.addf %134, %136 : vector<1x128xf32>
    %cst_21 = arith.constant 5.000000e-01 : f32
    %138 = vector.broadcast %cst_21 : f32 to vector<1x128xf32>
    %139 = arith.mulf %138, %137 : vector<1x128xf32>
    %140 = math.tanh %139 : vector<1x128xf32>
    %cst_22 = arith.constant 5.000000e-01 : f32
    %141 = vector.broadcast %cst_22 : f32 to vector<1x128xf32>
    %142 = arith.mulf %141, %140 : vector<1x128xf32>
    %cst_23 = arith.constant 5.000000e-01 : f32
    %143 = vector.broadcast %cst_23 : f32 to vector<1x128xf32>
    %144 = arith.addf %142, %143 : vector<1x128xf32>
    %c25 = arith.constant 25 : index
    %145 = memref.load %arg1[%c25] : memref<58xf32, #tpu.memory_space<smem>>
    %146 = vector.broadcast %145 : f32 to vector<1x128xf32>
    %147 = arith.mulf %18, %146 : vector<1x128xf32>
    %c26 = arith.constant 26 : index
    %148 = memref.load %arg1[%c26] : memref<58xf32, #tpu.memory_space<smem>>
    %149 = vector.broadcast %148 : f32 to vector<1x128xf32>
    %150 = arith.mulf %35, %149 : vector<1x128xf32>
    %151 = arith.addf %147, %150 : vector<1x128xf32>
    %c27 = arith.constant 27 : index
    %152 = memref.load %arg1[%c27] : memref<58xf32, #tpu.memory_space<smem>>
    %153 = vector.broadcast %152 : f32 to vector<1x128xf32>
    %154 = arith.mulf %52, %153 : vector<1x128xf32>
    %155 = arith.addf %151, %154 : vector<1x128xf32>
    %c28 = arith.constant 28 : index
    %156 = memref.load %arg1[%c28] : memref<58xf32, #tpu.memory_space<smem>>
    %157 = vector.broadcast %156 : f32 to vector<1x128xf32>
    %158 = arith.mulf %69, %157 : vector<1x128xf32>
    %159 = arith.addf %155, %158 : vector<1x128xf32>
    %c29 = arith.constant 29 : index
    %160 = memref.load %arg1[%c29] : memref<58xf32, #tpu.memory_space<smem>>
    %161 = vector.broadcast %160 : f32 to vector<1x128xf32>
    %162 = arith.mulf %86, %161 : vector<1x128xf32>
    %163 = arith.addf %159, %162 : vector<1x128xf32>
    %c47 = arith.constant 47 : index
    %164 = memref.load %arg1[%c47] : memref<58xf32, #tpu.memory_space<smem>>
    %165 = vector.broadcast %164 : f32 to vector<1x128xf32>
    %166 = arith.addf %163, %165 : vector<1x128xf32>
    %cst_24 = arith.constant 5.000000e-01 : f32
    %167 = vector.broadcast %cst_24 : f32 to vector<1x128xf32>
    %168 = arith.mulf %167, %166 : vector<1x128xf32>
    %169 = math.tanh %168 : vector<1x128xf32>
    %cst_25 = arith.constant 5.000000e-01 : f32
    %170 = vector.broadcast %cst_25 : f32 to vector<1x128xf32>
    %171 = arith.mulf %170, %169 : vector<1x128xf32>
    %cst_26 = arith.constant 5.000000e-01 : f32
    %172 = vector.broadcast %cst_26 : f32 to vector<1x128xf32>
    %173 = arith.addf %171, %172 : vector<1x128xf32>
    %c30 = arith.constant 30 : index
    %174 = memref.load %arg1[%c30] : memref<58xf32, #tpu.memory_space<smem>>
    %175 = vector.broadcast %174 : f32 to vector<1x128xf32>
    %176 = arith.mulf %18, %175 : vector<1x128xf32>
    %c31 = arith.constant 31 : index
    %177 = memref.load %arg1[%c31] : memref<58xf32, #tpu.memory_space<smem>>
    %178 = vector.broadcast %177 : f32 to vector<1x128xf32>
    %179 = arith.mulf %35, %178 : vector<1x128xf32>
    %180 = arith.addf %176, %179 : vector<1x128xf32>
    %c32 = arith.constant 32 : index
    %181 = memref.load %arg1[%c32] : memref<58xf32, #tpu.memory_space<smem>>
    %182 = vector.broadcast %181 : f32 to vector<1x128xf32>
    %183 = arith.mulf %52, %182 : vector<1x128xf32>
    %184 = arith.addf %180, %183 : vector<1x128xf32>
    %c33 = arith.constant 33 : index
    %185 = memref.load %arg1[%c33] : memref<58xf32, #tpu.memory_space<smem>>
    %186 = vector.broadcast %185 : f32 to vector<1x128xf32>
    %187 = arith.mulf %69, %186 : vector<1x128xf32>
    %188 = arith.addf %184, %187 : vector<1x128xf32>
    %c34 = arith.constant 34 : index
    %189 = memref.load %arg1[%c34] : memref<58xf32, #tpu.memory_space<smem>>
    %190 = vector.broadcast %189 : f32 to vector<1x128xf32>
    %191 = arith.mulf %86, %190 : vector<1x128xf32>
    %192 = arith.addf %188, %191 : vector<1x128xf32>
    %c48 = arith.constant 48 : index
    %193 = memref.load %arg1[%c48] : memref<58xf32, #tpu.memory_space<smem>>
    %194 = vector.broadcast %193 : f32 to vector<1x128xf32>
    %195 = arith.addf %192, %194 : vector<1x128xf32>
    %cst_27 = arith.constant 5.000000e-01 : f32
    %196 = vector.broadcast %cst_27 : f32 to vector<1x128xf32>
    %197 = arith.mulf %196, %195 : vector<1x128xf32>
    %198 = math.tanh %197 : vector<1x128xf32>
    %cst_28 = arith.constant 5.000000e-01 : f32
    %199 = vector.broadcast %cst_28 : f32 to vector<1x128xf32>
    %200 = arith.mulf %199, %198 : vector<1x128xf32>
    %cst_29 = arith.constant 5.000000e-01 : f32
    %201 = vector.broadcast %cst_29 : f32 to vector<1x128xf32>
    %202 = arith.addf %200, %201 : vector<1x128xf32>
    %c35 = arith.constant 35 : index
    %203 = memref.load %arg1[%c35] : memref<58xf32, #tpu.memory_space<smem>>
    %204 = vector.broadcast %203 : f32 to vector<1x128xf32>
    %205 = arith.mulf %18, %204 : vector<1x128xf32>
    %c36 = arith.constant 36 : index
    %206 = memref.load %arg1[%c36] : memref<58xf32, #tpu.memory_space<smem>>
    %207 = vector.broadcast %206 : f32 to vector<1x128xf32>
    %208 = arith.mulf %35, %207 : vector<1x128xf32>
    %209 = arith.addf %205, %208 : vector<1x128xf32>
    %c37 = arith.constant 37 : index
    %210 = memref.load %arg1[%c37] : memref<58xf32, #tpu.memory_space<smem>>
    %211 = vector.broadcast %210 : f32 to vector<1x128xf32>
    %212 = arith.mulf %52, %211 : vector<1x128xf32>
    %213 = arith.addf %209, %212 : vector<1x128xf32>
    %c38 = arith.constant 38 : index
    %214 = memref.load %arg1[%c38] : memref<58xf32, #tpu.memory_space<smem>>
    %215 = vector.broadcast %214 : f32 to vector<1x128xf32>
    %216 = arith.mulf %69, %215 : vector<1x128xf32>
    %217 = arith.addf %213, %216 : vector<1x128xf32>
    %c39 = arith.constant 39 : index
    %218 = memref.load %arg1[%c39] : memref<58xf32, #tpu.memory_space<smem>>
    %219 = vector.broadcast %218 : f32 to vector<1x128xf32>
    %220 = arith.mulf %86, %219 : vector<1x128xf32>
    %221 = arith.addf %217, %220 : vector<1x128xf32>
    %c49 = arith.constant 49 : index
    %222 = memref.load %arg1[%c49] : memref<58xf32, #tpu.memory_space<smem>>
    %223 = vector.broadcast %222 : f32 to vector<1x128xf32>
    %224 = arith.addf %221, %223 : vector<1x128xf32>
    %cst_30 = arith.constant 5.000000e-01 : f32
    %225 = vector.broadcast %cst_30 : f32 to vector<1x128xf32>
    %226 = arith.mulf %225, %224 : vector<1x128xf32>
    %227 = math.tanh %226 : vector<1x128xf32>
    %cst_31 = arith.constant 5.000000e-01 : f32
    %228 = vector.broadcast %cst_31 : f32 to vector<1x128xf32>
    %229 = arith.mulf %228, %227 : vector<1x128xf32>
    %cst_32 = arith.constant 5.000000e-01 : f32
    %230 = vector.broadcast %cst_32 : f32 to vector<1x128xf32>
    %231 = arith.addf %229, %230 : vector<1x128xf32>
    %c40 = arith.constant 40 : index
    %232 = memref.load %arg1[%c40] : memref<58xf32, #tpu.memory_space<smem>>
    %233 = vector.broadcast %232 : f32 to vector<1x128xf32>
    %234 = arith.mulf %18, %233 : vector<1x128xf32>
    %c41 = arith.constant 41 : index
    %235 = memref.load %arg1[%c41] : memref<58xf32, #tpu.memory_space<smem>>
    %236 = vector.broadcast %235 : f32 to vector<1x128xf32>
    %237 = arith.mulf %35, %236 : vector<1x128xf32>
    %238 = arith.addf %234, %237 : vector<1x128xf32>
    %c42 = arith.constant 42 : index
    %239 = memref.load %arg1[%c42] : memref<58xf32, #tpu.memory_space<smem>>
    %240 = vector.broadcast %239 : f32 to vector<1x128xf32>
    %241 = arith.mulf %52, %240 : vector<1x128xf32>
    %242 = arith.addf %238, %241 : vector<1x128xf32>
    %c43 = arith.constant 43 : index
    %243 = memref.load %arg1[%c43] : memref<58xf32, #tpu.memory_space<smem>>
    %244 = vector.broadcast %243 : f32 to vector<1x128xf32>
    %245 = arith.mulf %69, %244 : vector<1x128xf32>
    %246 = arith.addf %242, %245 : vector<1x128xf32>
    %c44 = arith.constant 44 : index
    %247 = memref.load %arg1[%c44] : memref<58xf32, #tpu.memory_space<smem>>
    %248 = vector.broadcast %247 : f32 to vector<1x128xf32>
    %249 = arith.mulf %86, %248 : vector<1x128xf32>
    %250 = arith.addf %246, %249 : vector<1x128xf32>
    %c50 = arith.constant 50 : index
    %251 = memref.load %arg1[%c50] : memref<58xf32, #tpu.memory_space<smem>>
    %252 = vector.broadcast %251 : f32 to vector<1x128xf32>
    %253 = arith.addf %250, %252 : vector<1x128xf32>
    %cst_33 = arith.constant 5.000000e-01 : f32
    %254 = vector.broadcast %cst_33 : f32 to vector<1x128xf32>
    %255 = arith.mulf %254, %253 : vector<1x128xf32>
    %256 = math.tanh %255 : vector<1x128xf32>
    %cst_34 = arith.constant 5.000000e-01 : f32
    %257 = vector.broadcast %cst_34 : f32 to vector<1x128xf32>
    %258 = arith.mulf %257, %256 : vector<1x128xf32>
    %cst_35 = arith.constant 5.000000e-01 : f32
    %259 = vector.broadcast %cst_35 : f32 to vector<1x128xf32>
    %260 = arith.addf %258, %259 : vector<1x128xf32>
    %c51 = arith.constant 51 : index
    %261 = memref.load %arg1[%c51] : memref<58xf32, #tpu.memory_space<smem>>
    %262 = vector.broadcast %261 : f32 to vector<1x128xf32>
    %263 = arith.mulf %115, %262 : vector<1x128xf32>
    %c52 = arith.constant 52 : index
    %264 = memref.load %arg1[%c52] : memref<58xf32, #tpu.memory_space<smem>>
    %265 = vector.broadcast %264 : f32 to vector<1x128xf32>
    %266 = arith.mulf %144, %265 : vector<1x128xf32>
    %267 = arith.addf %263, %266 : vector<1x128xf32>
    %c53 = arith.constant 53 : index
    %268 = memref.load %arg1[%c53] : memref<58xf32, #tpu.memory_space<smem>>
    %269 = vector.broadcast %268 : f32 to vector<1x128xf32>
    %270 = arith.mulf %173, %269 : vector<1x128xf32>
    %271 = arith.addf %267, %270 : vector<1x128xf32>
    %c54 = arith.constant 54 : index
    %272 = memref.load %arg1[%c54] : memref<58xf32, #tpu.memory_space<smem>>
    %273 = vector.broadcast %272 : f32 to vector<1x128xf32>
    %274 = arith.mulf %202, %273 : vector<1x128xf32>
    %275 = arith.addf %271, %274 : vector<1x128xf32>
    %c55 = arith.constant 55 : index
    %276 = memref.load %arg1[%c55] : memref<58xf32, #tpu.memory_space<smem>>
    %277 = vector.broadcast %276 : f32 to vector<1x128xf32>
    %278 = arith.mulf %231, %277 : vector<1x128xf32>
    %279 = arith.addf %275, %278 : vector<1x128xf32>
    %c56 = arith.constant 56 : index
    %280 = memref.load %arg1[%c56] : memref<58xf32, #tpu.memory_space<smem>>
    %281 = vector.broadcast %280 : f32 to vector<1x128xf32>
    %282 = arith.mulf %260, %281 : vector<1x128xf32>
    %283 = arith.addf %279, %282 : vector<1x128xf32>
    %c57 = arith.constant 57 : index
    %284 = memref.load %arg1[%c57] : memref<58xf32, #tpu.memory_space<smem>>
    %285 = vector.broadcast %284 : f32 to vector<1x128xf32>
    %286 = arith.addf %283, %285 : vector<1x128xf32>
    %cst_36 = arith.constant 5.000000e-01 : f32
    %287 = vector.broadcast %cst_36 : f32 to vector<1x128xf32>
    %288 = arith.mulf %287, %286 : vector<1x128xf32>
    %289 = math.tanh %288 : vector<1x128xf32>
    %cst_37 = arith.constant 5.000000e-01 : f32
    %290 = vector.broadcast %cst_37 : f32 to vector<1x128xf32>
    %291 = arith.mulf %290, %289 : vector<1x128xf32>
    %cst_38 = arith.constant 5.000000e-01 : f32
    %292 = vector.broadcast %cst_38 : f32 to vector<1x128xf32>
    %293 = arith.addf %291, %292 : vector<1x128xf32>
    %c0_39 = arith.constant 0 : index
    %c0_40 = arith.constant 0 : index
    %294 = vector.load %arg3[%c0_39, %c0_40] : memref<1x128xf32, #tpu.memory_space<vmem>>, vector<1x128xf32>
    tpu.vector_store %arg3[%c0_39, %c0_40], %293 {strides = array<i32>} : memref<1x128xf32, #tpu.memory_space<vmem>>, vector<1x128xf32>,
    return
  }
  func.func @transform_0(%arg0: i32) -> i32 {
    %c0_i32 = arith.constant 0 : i32
    %c0_i32_0 = arith.constant 0 : i32
    return %c0_i32 : i32
  }
  func.func @transform_1(%arg0: i32) -> (i32, i32) {
    %c0_i32 = arith.constant 0 : i32
    %c0_i32_0 = arith.constant 0 : i32
    return %c0_i32, %arg0 : i32, i32
  }
  func.func @transform_2(%arg0: i32) -> (i32, i32) {
    %c0_i32 = arith.constant 0 : i32
    %c0_i32_0 = arith.constant 0 : i32
    return %c0_i32, %arg0 : i32, i32
  }
}

</mosaic_0001>

<llo_original>
// kernel: mlp_forward.1
$region0: #{mlp_forward.1}
  #allocation0 [shape = 'u32[]', space=smem, size = 0x4, offset = 0x4, fixed_abs, tag = 'smem constant byte address 0x4 - core index']
  #allocation1 [shape = 'u32[144,128]{1,0:T(1,128)}', space=vmem, size = 0x12000, scoped, tag = 'internal scratch']
  %s0 = inlined_call_operand.vmem [shape: f32[58], index: 0, kind: input, shape index: {}]
  %s1 = inlined_call_operand.vmem [shape: f32[2,128], index: 1, kind: input, shape index: {}]
  %s2 = inlined_call_operand.vmem [shape: f32[1,128], index: 2, kind: output, shape index: {}]
  %s3 = sld [smem:[#allocation0]]
  $region22: #{mlp_forward.1} parent=0
    _
  %s5 = ssub.s32 1, %s3
  %s6 = scalar_select 0, %s5, %s3
  $region1: #{mlp_forward.1} parent=0
    #allocation2 [shape = 'u8[512]{0}', space=smem, size = 0x200, scoped, tag = 'input window, operand 0, single buffered']
    #allocation3 [shape = 's32[1]{0}', space=sflag, size = 0x4, scoped, tag = 'scoped memory for mlp_forward.1']
    %7 = vsyncpa [#allocation3], 0
    // Predicated region
    $region2: #{mlp_forward.1} parent=1 // pred_check
      _
    $region3: #{mlp_forward.1} parent=1 // pred_check_branch
      %9 = sbr.rel (0) target = $region5
    $region4: #{mlp_forward.1} parent=1 // pred_region
      %s11 = ssub.s32 16, 16
      %12 = vsyncadd [#allocation3], %s11
      %s14 = sshll.u32 %s0, 4
      %s15 = int_to_ptr.vmem [resolvable:$true] %s14
      %17 = dma.vmem_to_smem %s15, 16, [#allocation2], [#allocation3]
    $region5: #{mlp_forward.1} parent=1 // pred_fallthru
      _
    // Predicated region
    $region6: #{mlp_forward.1} parent=1 // pred_check
      _
    $region7: #{mlp_forward.1} parent=1 // pred_check_branch
      %19 = sbr.rel (0) target = $region9
    $region8: #{mlp_forward.1} parent=1 // pred_region
      _
    $region9: #{mlp_forward.1} parent=1 // pred_fallthru
      _
    // Predicated region
    $region10: #{mlp_forward.1} parent=1 // pred_check
      _
    $region11: #{mlp_forward.1} parent=1 // pred_check_branch
      %21 = sbr.rel (0) target = $region13
    $region12: #{mlp_forward.1} parent=1 // pred_region
      %22 = dma.done [#allocation3], 16
    $region13: #{mlp_forward.1} parent=1 // pred_fallthru
      _
    %23 = sfence
    %v24 = vld [vmem:[%s1] sm:$0x1]
    %v25 = vld [vmem:[%s1 + $0x1] sm:$0x1]
    %s26 = sld [smem:[#allocation2]]
    %v27 = vstv %s26
    %v28 = vmul.f32 %v24, %v27
    %s29 = sld [smem:[#allocation2 + $0x1]]
    %v30 = vstv %s29
    %v31 = vmul.f32 %v25, %v30
    %v32 = vadd.f32 %v28, %v31
    %s33 = sld [smem:[#allocation2 + $0xa]]
    %v34 = vstv %s33
    %v35 = vadd.f32 %v32, %v34
    %v36 = vmul.f32 %v35, 0.5
    %v37 = vtanh.pop %v36
    %v38 = vmul.f32 %v37, 0.5
    %v39 = vadd.f32 %v38, 0.5
    %s40 = sld [smem:[#allocation2 + $0x2]]
    %v41 = vstv %s40
    %v42 = vmul.f32 %v24, %v41
    %s43 = sld [smem:[#allocation2 + $0x3]]
    %v44 = vstv %s43
    %v45 = vmul.f32 %v25, %v44
    %v46 = vadd.f32 %v42, %v45
    %s47 = sld [smem:[#allocation2 + $0xb]]
    %v48 = vstv %s47
    %v49 = vadd.f32 %v46, %v48
    %v50 = vmul.f32 %v49, 0.5
    %v51 = vtanh.pop %v50
    %v52 = vmul.f32 %v51, 0.5
    %v53 = vadd.f32 %v52, 0.5
    %s54 = sld [smem:[#allocation2 + $0x4]]
    %v55 = vstv %s54
    %v56 = vmul.f32 %v24, %v55
    %s57 = sld [smem:[#allocation2 + $0x5]]
    %v58 = vstv %s57
    %v59 = vmul.f32 %v25, %v58
    %v60 = vadd.f32 %v56, %v59
    %s61 = sld [smem:[#allocation2 + $0xc]]
    %v62 = vstv %s61
    %v63 = vadd.f32 %v60, %v62
    %v64 = vmul.f32 %v63, 0.5
    %v65 = vtanh.pop %v64
    %v66 = vmul.f32 %v65, 0.5
    %v67 = vadd.f32 %v66, 0.5
    %s68 = sld [smem:[#allocation2 + $0x6]]
    %v69 = vstv %s68
    %v70 = vmul.f32 %v24, %v69
    %s71 = sld [smem:[#allocation2 + $0x7]]
    %v72 = vstv %s71
    %v73 = vmul.f32 %v25, %v72
    %v74 = vadd.f32 %v70, %v73
    %s75 = sld [smem:[#allocation2 + $0xd]]
    %v76 = vstv %s75
    %v77 = vadd.f32 %v74, %v76
    %v78 = vmul.f32 %v77, 0.5
    %v79 = vtanh.pop %v78
    %v80 = vmul.f32 %v79, 0.5
    %v81 = vadd.f32 %v80, 0.5
    %s82 = sld [smem:[#allocation2 + $0x8]]
    %v83 = vstv %s82
    %v84 = vmul.f32 %v24, %v83
    %s85 = sld [smem:[#allocation2 + $0x9]]
    %v86 = vstv %s85
    %v87 = vmul.f32 %v25, %v86
    %v88 = vadd.f32 %v84, %v87
    %s89 = sld [smem:[#allocation2 + $0xe]]
    %v90 = vstv %s89
    %v91 = vadd.f32 %v88, %v90
    %v92 = vmul.f32 %v91, 0.5
    %v93 = vtanh.pop %v92
    %v94 = vmul.f32 %v93, 0.5
    %v95 = vadd.f32 %v94, 0.5
    %s96 = sld [smem:[#allocation2 + $0xf]]
    %v97 = vstv %s96
    %v98 = vmul.f32 %v39, %v97
    %s99 = sld [smem:[#allocation2 + $0x10]]
    %v100 = vstv %s99
    %v101 = vmul.f32 %v53, %v100
    %v102 = vadd.f32 %v98, %v101
    %s103 = sld [smem:[#allocation2 + $0x11]]
    %v104 = vstv %s103
    %v105 = vmul.f32 %v67, %v104
    %v106 = vadd.f32 %v102, %v105
    %s107 = sld [smem:[#allocation2 + $0x12]]
    %v108 = vstv %s107
    %v109 = vmul.f32 %v81, %v108
    %v110 = vadd.f32 %v106, %v109
    %s111 = sld [smem:[#allocation2 + $0x13]]
    %v112 = vstv %s111
    %v113 = vmul.f32 %v95, %v112
    %v114 = vadd.f32 %v110, %v113
    %s115 = sld [smem:[#allocation2 + $0x2d]]
    %v116 = vstv %s115
    %v117 = vadd.f32 %v114, %v116
    %v118 = vmul.f32 %v117, 0.5
    %v119 = vtanh.pop %v118
    %v120 = vmul.f32 %v119, 0.5
    %v121 = vadd.f32 %v120, 0.5
    %s122 = sld [smem:[#allocation2 + $0x14]]
    %v123 = vstv %s122
    %v124 = vmul.f32 %v39, %v123
    %s125 = sld [smem:[#allocation2 + $0x15]]
    %v126 = vstv %s125
    %v127 = vmul.f32 %v53, %v126
    %v128 = vadd.f32 %v124, %v127
    %s129 = sld [smem:[#allocation2 + $0x16]]
    %v130 = vstv %s129
    %v131 = vmul.f32 %v67, %v130
    %v132 = vadd.f32 %v128, %v131
    %s133 = sld [smem:[#allocation2 + $0x17]]
    %v134 = vstv %s133
    %v135 = vmul.f32 %v81, %v134
    %v136 = vadd.f32 %v132, %v135
    %s137 = sld [smem:[#allocation2 + $0x18]]
    %v138 = vstv %s137
    %v139 = vmul.f32 %v95, %v138
    %v140 = vadd.f32 %v136, %v139
    %s141 = sld [smem:[#allocation2 + $0x2e]]
    %v142 = vstv %s141
    %v143 = vadd.f32 %v140, %v142
    %v144 = vmul.f32 %v143, 0.5
    %v145 = vtanh.pop %v144
    %v146 = vmul.f32 %v145, 0.5
    %v147 = vadd.f32 %v146, 0.5
    %s148 = sld [smem:[#allocation2 + $0x19]]
    %v149 = vstv %s148
    %v150 = vmul.f32 %v39, %v149
    %s151 = sld [smem:[#allocation2 + $0x1a]]
    %v152 = vstv %s151
    %v153 = vmul.f32 %v53, %v152
    %v154 = vadd.f32 %v150, %v153
    %s155 = sld [smem:[#allocation2 + $0x1b]]
    %v156 = vstv %s155
    %v157 = vmul.f32 %v67, %v156
    %v158 = vadd.f32 %v154, %v157
    %s159 = sld [smem:[#allocation2 + $0x1c]]
    %v160 = vstv %s159
    %v161 = vmul.f32 %v81, %v160
    %v162 = vadd.f32 %v158, %v161
    %s163 = sld [smem:[#allocation2 + $0x1d]]
    %v164 = vstv %s163
    %v165 = vmul.f32 %v95, %v164
    %v166 = vadd.f32 %v162, %v165
    %s167 = sld [smem:[#allocation2 + $0x2f]]
    %v168 = vstv %s167
    %v169 = vadd.f32 %v166, %v168
    %v170 = vmul.f32 %v169, 0.5
    %v171 = vtanh.pop %v170
    %v172 = vmul.f32 %v171, 0.5
    %v173 = vadd.f32 %v172, 0.5
    %s174 = sld [smem:[#allocation2 + $0x1e]]
    %v175 = vstv %s174
    %v176 = vmul.f32 %v39, %v175
    %s177 = sld [smem:[#allocation2 + $0x1f]]
    %v178 = vstv %s177
    %v179 = vmul.f32 %v53, %v178
    %v180 = vadd.f32 %v176, %v179
    %s181 = sld [smem:[#allocation2 + $0x20]]
    %v182 = vstv %s181
    %v183 = vmul.f32 %v67, %v182
    %v184 = vadd.f32 %v180, %v183
    %s185 = sld [smem:[#allocation2 + $0x21]]
    %v186 = vstv %s185
    %v187 = vmul.f32 %v81, %v186
    %v188 = vadd.f32 %v184, %v187
    %s189 = sld [smem:[#allocation2 + $0x22]]
    %v190 = vstv %s189
    %v191 = vmul.f32 %v95, %v190
    %v192 = vadd.f32 %v188, %v191
    %s193 = sld [smem:[#allocation2 + $0x30]]
    %v194 = vstv %s193
    %v195 = vadd.f32 %v192, %v194
    %v196 = vmul.f32 %v195, 0.5
    %v197 = vtanh.pop %v196
    %v198 = vmul.f32 %v197, 0.5
    %v199 = vadd.f32 %v198, 0.5
    %s200 = sld [smem:[#allocation2 + $0x23]]
    %v201 = vstv %s200
    %v202 = vmul.f32 %v39, %v201
    %s203 = sld [smem:[#allocation2 + $0x24]]
    %v204 = vstv %s203
    %v205 = vmul.f32 %v53, %v204
    %v206 = vadd.f32 %v202, %v205
    %s207 = sld [smem:[#allocation2 + $0x25]]
    %v208 = vstv %s207
    %v209 = vmul.f32 %v67, %v208
    %v210 = vadd.f32 %v206, %v209
    %s211 = sld [smem:[#allocation2 + $0x26]]
    %v212 = vstv %s211
    %v213 = vmul.f32 %v81, %v212
    %v214 = vadd.f32 %v210, %v213
    %s215 = sld [smem:[#allocation2 + $0x27]]
    %v216 = vstv %s215
    %v217 = vmul.f32 %v95, %v216
    %v218 = vadd.f32 %v214, %v217
    %s219 = sld [smem:[#allocation2 + $0x31]]
    %v220 = vstv %s219
    %v221 = vadd.f32 %v218, %v220
    %v222 = vmul.f32 %v221, 0.5
    %v223 = vtanh.pop %v222
    %v224 = vmul.f32 %v223, 0.5
    %v225 = vadd.f32 %v224, 0.5
    %s226 = sld [smem:[#allocation2 + $0x28]]
    %v227 = vstv %s226
    %v228 = vmul.f32 %v39, %v227
    %s229 = sld [smem:[#allocation2 + $0x29]]
    %v230 = vstv %s229
    %v231 = vmul.f32 %v53, %v230
    %v232 = vadd.f32 %v228, %v231
    %s233 = sld [smem:[#allocation2 + $0x2a]]
    %v234 = vstv %s233
    %v235 = vmul.f32 %v67, %v234
    %v236 = vadd.f32 %v232, %v235
    %s237 = sld [smem:[#allocation2 + $0x2b]]
    %v238 = vstv %s237
    %v239 = vmul.f32 %v81, %v238
    %v240 = vadd.f32 %v236, %v239
    %s241 = sld [smem:[#allocation2 + $0x2c]]
    %v242 = vstv %s241
    %v243 = vmul.f32 %v95, %v242
    %v244 = vadd.f32 %v240, %v243
    %s245 = sld [smem:[#allocation2 + $0x32]]
    %v246 = vstv %s245
    %v247 = vadd.f32 %v244, %v246
    %v248 = vmul.f32 %v247, 0.5
    %v249 = vtanh.pop %v248
    %v250 = vmul.f32 %v249, 0.5
    %v251 = vadd.f32 %v250, 0.5
    %s252 = sld [smem:[#allocation2 + $0x33]]
    %v253 = vstv %s252
    %v254 = vmul.f32 %v121, %v253
    %s255 = sld [smem:[#allocation2 + $0x34]]
    %v256 = vstv %s255
    %v257 = vmul.f32 %v147, %v256
    %v258 = vadd.f32 %v254, %v257
    %s259 = sld [smem:[#allocation2 + $0x35]]
    %v260 = vstv %s259
    %v261 = vmul.f32 %v173, %v260
    %v262 = vadd.f32 %v258, %v261
    %s263 = sld [smem:[#allocation2 + $0x36]]
    %v264 = vstv %s263
    %v265 = vmul.f32 %v199, %v264
    %v266 = vadd.f32 %v262, %v265
    %s267 = sld [smem:[#allocation2 + $0x37]]
    %v268 = vstv %s267
    %v269 = vmul.f32 %v225, %v268
    %v270 = vadd.f32 %v266, %v269
    %s271 = sld [smem:[#allocation2 + $0x38]]
    %v272 = vstv %s271
    %v273 = vmul.f32 %v251, %v272
    %v274 = vadd.f32 %v270, %v273
    %s275 = sld [smem:[#allocation2 + $0x39]]
    %v276 = vstv %s275
    %v277 = vadd.f32 %v274, %v276
    %v278 = vmul.f32 %v277, 0.5
    %v279 = vtanh.pop %v278
    %v280 = vmul.f32 %v279, 0.5
    %v281 = vadd.f32 %v280, 0.5
    %282 = vst [vmem:[%s2] sm:$0x1] %v281
    // Predicated region
    $region14: #{mlp_forward.1} parent=1 // pred_check
      _
    $region15: #{mlp_forward.1} parent=1 // pred_check_branch
      %284 = sbr.rel (0) target = $region17
    $region16: #{mlp_forward.1} parent=1 // pred_region
      _
    $region17: #{mlp_forward.1} parent=1 // pred_fallthru
      _
    // Predicated region
    $region18: #{mlp_forward.1} parent=1 // pred_check
      _
    $region19: #{mlp_forward.1} parent=1 // pred_check_branch
      %286 = sbr.rel (0) target = $region21
    $region20: #{mlp_forward.1} parent=1 // pred_region
      _
    $region21: #{mlp_forward.1} parent=1 // pred_fallthru
      _
    %287 = vsyncpa [#allocation3], 1

</llo_original>
